<compile_context>
chip_gen: v7x
topology: tpu7x:2x2x1
jax: 0.10.0
libtpu: 0.0.40
codegen_flags: <defaults>
</compile_context>

<pallas_src>
import jax
import jax.numpy as jnp
from jax.experimental import pallas as pl
from jax.experimental.pallas import tpu as pltpu

_EPS = 1e-7
_LANE_CHOICES = (1024, 512, 256, 128)       # widest lane-dense slab that divides n
_TARGET_BLOCK_BYTES = 8 * 1024 * 1024       # ~8 MiB per block
_VMEM_LIMIT_BYTES = 40 * 1024 * 1024        # in+out double-buffered <= 32 MiB + headroom
_MIN_BLOCKS = 4                             # >= 2 blocks per TensorCore on v7x


def _softexp_kernel(params_ref, x_ref, o_ref):
    # params_ref: SMEM (4,) f32 = [neg_alpha, pos_alpha, 1/neg_alpha, 1/pos_alpha]
    neg_alpha = params_ref[0]
    pos_alpha = params_ref[1]
    inv_neg = params_ref[2]
    inv_pos = params_ref[3]

    x = x_ref[...].astype(jnp.float32)
    pos_x = jnp.maximum(x, 0.0) + _EPS
    log_part = jnp.log(neg_alpha * pos_x + 1.0) * inv_neg
    exp_part = (jnp.exp(pos_alpha * pos_x) - 1.0) * inv_pos
    o_ref[...] = (log_part + exp_part).astype(o_ref.dtype)


def _alpha_params(alpha):
    """Hoisted scalar prep: clamp, relu, +eps, reciprocals (all done once)."""
    a = jnp.clip(jnp.asarray(alpha, dtype=jnp.float32), -1.0, 1.0)
    neg_alpha = jnp.maximum(-a, 0.0) + _EPS
    pos_alpha = jnp.maximum(a, 0.0) + _EPS
    return jnp.stack([neg_alpha, pos_alpha, 1.0 / neg_alpha, 1.0 / pos_alpha])


def _softexp_jnp(x, params):
    """Same formula as the kernel; used for tiny arrays / ragged tails."""
    neg_alpha, pos_alpha, inv_neg, inv_pos = params[0], params[1], params[2], params[3]
    xf = x.astype(jnp.float32)
    pos_x = jnp.maximum(xf, 0.0) + _EPS
    out = (jnp.log(neg_alpha * pos_x + 1.0) * inv_neg
           + (jnp.exp(pos_alpha * pos_x) - 1.0) * inv_pos)
    return out.astype(x.dtype)


def _sublane_multiple(dtype):
    # Native TPU tiling: (8,128) for 4-byte, (16,128) for 2-byte, (32,128) 1-byte.
    itemsize = jnp.dtype(dtype).itemsize
    return {4: 8, 2: 16, 1: 32}.get(itemsize, 8)


def _run_aligned(x2, params, lane):
    """Run the kernel on a lane-dense (rows, lane) slab (lane % 128 == 0)."""
    rows = x2.shape[0]
    dtype = x2.dtype
    itemsize = jnp.dtype(dtype).itemsize
    sub = _sublane_multiple(dtype)

    # Row-block size: cap at ~8 MiB, but also target at least _MIN_BLOCKS
    # blocks so DMA/compute pipelining happens and both v7x TensorCores are
    # fed.  Fall back to one full-extent block only for tiny arrays.
    cap_rows = max(sub, (_TARGET_BLOCK_BYTES // (lane * itemsize)) // sub * sub)
    if rows <= 2 * sub:
        br = rows                                   # tiny: full extent (always legal)
    else:
        target = pl.cdiv(rows, _MIN_BLOCKS)
        target = pl.cdiv(target, sub) * sub         # round up to sublane multiple
        br = max(sub, min(cap_rows, target))
    grid = (pl.cdiv(rows, br),)                     # Pallas clips the boundary block

    return pl.pallas_call(
        _softexp_kernel,
        out_shape=jax.ShapeDtypeStruct((rows, lane), dtype),
        grid=grid,
        in_specs=[
            pl.BlockSpec(memory_space=pltpu.MemorySpace.SMEM),    # alpha params
            pl.BlockSpec((br, lane), lambda i: (i, 0)),           # x tile
        ],
        out_specs=pl.BlockSpec((br, lane), lambda i: (i, 0)),
        compiler_params=pltpu.CompilerParams(
            dimension_semantics=("parallel",),
            vmem_limit_bytes=_VMEM_LIMIT_BYTES),
    )(params, x2)


def rectified_softexp(x, alpha):
    """Apply RectifiedSoftExp elementwise to x (any shape) with scalar alpha."""
    orig_shape = x.shape
    n = x.size
    if n == 0:
        return x
    params = _alpha_params(alpha)

    # Widest lane width (multiple of 128) that divides n -> zero-copy fast path.
    lane = None
    for cand in _LANE_CHOICES:
        if n % cand == 0:
            lane = cand
            break

    if lane is not None:
        x2 = jnp.reshape(x, (n // lane, lane))      # free view of contiguous data
        return _run_aligned(x2, params, lane).reshape(orig_shape)

    # Ragged: kernel on the 128-aligned prefix, plain jnp on the (<128) tail.
    # TODO(synk): a fully copy-free ragged path would need manual DMA with
    # clipped pl.ds lengths; not worth it for this elementwise op.
    x_flat = jnp.ravel(x)
    n_main = (n // 128) * 128
    if n_main == 0:
        return _softexp_jnp(x_flat, params).reshape(orig_shape)
    out_main = _run_aligned(
        x_flat[:n_main].reshape(n_main // 128, 128), params, 128).reshape(-1)
    out_tail = _softexp_jnp(x_flat[n_main:], params)
    return jnp.concatenate([out_main, out_tail]).reshape(orig_shape)


def _reference(x, alpha):
    a = jnp.clip(alpha, -1.0, 1.0)
    neg_alpha = jnp.maximum(-a, 0.0) + _EPS
    pos_alpha = jnp.maximum(a, 0.0) + _EPS
    pos_x = jnp.maximum(x, 0.0) + _EPS
    return (jnp.log(neg_alpha * pos_x + 1.0) / neg_alpha
            + (jnp.exp(pos_alpha * pos_x) - 1.0) / pos_alpha)


if __name__ == "__main__":
    key = jax.random.PRNGKey(0)
    # Input consistent with a conv feature map: NCHW = (2, 4, 16, 16)
    x = jax.random.normal(key, (2, 4, 16, 16), dtype=jnp.float32)

    # Deterministic parameter init, matching nn.Parameter(torch.tensor(0.0)).
    alpha = jnp.float32(0.0)

    out = jax.block_until_ready(rectified_softexp(x, alpha))
    ref = _reference(x, alpha)
    assert out.shape == x.shape and out.dtype == x.dtype
    assert jnp.allclose(out, ref, rtol=1e-5, atol=1e-5), "mismatch vs reference"

    # Ragged tiny shape (exercises the pure-jnp tail path).
    x2 = jax.random.normal(jax.random.PRNGKey(1), (3, 5, 7), dtype=jnp.float32)
    out2 = jax.block_until_ready(rectified_softexp(x2, jnp.float32(0.3)))
    assert jnp.allclose(out2, _reference(x2, jnp.float32(0.3)),
                        rtol=1e-5, atol=1e-5), "mismatch vs reference (ragged)"

    # Multi-block shape with a partial boundary block (exercises the
    # MIN_BLOCKS heuristic and Pallas boundary clipping).
    x3 = jax.random.normal(jax.random.PRNGKey(2), (33, 256), dtype=jnp.float32)
    out3 = jax.block_until_ready(rectified_softexp(x3, jnp.float32(-0.5)))
    assert jnp.allclose(out3, _reference(x3, jnp.float32(-0.5)),
                        rtol=1e-5, atol=1e-5), "mismatch vs reference (multi-block)"

    print("KERNEL_OK")
</pallas_src>

<mosaic_0001>
module attributes {stable_mosaic.version = 11 : i64} {
  func.func @_softexp_kernel(%arg0: i32, %arg1: memref<4xf32, #tpu.memory_space<smem>>, %arg2: memref<2x1024xf32, #tpu.memory_space<vmem>>, %arg3: memref<2x1024xf32, #tpu.memory_space<vmem>>) attributes {dimension_semantics = [#tpu.dimension_semantics<parallel>], iteration_bounds = array<i64: 1>, scalar_prefetch = 0 : i64, scratch_operands = 0 : i64, tpu.core_type = #tpu.core_type<tc>, window_params = [{transform_indices = @transform_0, window_bounds = array<i64: 4>}, {transform_indices = @transform_1, window_bounds = array<i64: 2, 1024>}, {transform_indices = @transform_2, window_bounds = array<i64: 2, 1024>}]} {
    %c0 = arith.constant 0 : index
    %0 = memref.load %arg1[%c0] : memref<4xf32, #tpu.memory_space<smem>>
    %c1 = arith.constant 1 : index
    %1 = memref.load %arg1[%c1] : memref<4xf32, #tpu.memory_space<smem>>
    %c2 = arith.constant 2 : index
    %2 = memref.load %arg1[%c2] : memref<4xf32, #tpu.memory_space<smem>>
    %c3 = arith.constant 3 : index
    %3 = memref.load %arg1[%c3] : memref<4xf32, #tpu.memory_space<smem>>
    %c0_0 = arith.constant 0 : index
    %c0_1 = arith.constant 0 : index
    %4 = vector.load %arg2[%c0_0, %c0_1] : memref<2x1024xf32, #tpu.memory_space<vmem>>, vector<2x1024xf32>
    %cst = arith.constant 0.000000e+00 : f32
    %5 = vector.broadcast %cst : f32 to vector<2x1024xf32>
    %6 = arith.maximumf %4, %5 : vector<2x1024xf32>
    %cst_2 = arith.constant 1.000000e-07 : f32
    %7 = vector.broadcast %cst_2 : f32 to vector<2x1024xf32>
    %8 = arith.addf %6, %7 : vector<2x1024xf32>
    %9 = vector.broadcast %0 : f32 to vector<2x1024xf32>
    %10 = arith.mulf %9, %8 : vector<2x1024xf32>
    %cst_3 = arith.constant 1.000000e+00 : f32
    %11 = vector.broadcast %cst_3 : f32 to vector<2x1024xf32>
    %12 = arith.addf %10, %11 : vector<2x1024xf32>
    %13 = math.log %12 : vector<2x1024xf32>
    %14 = vector.broadcast %2 : f32 to vector<2x1024xf32>
    %15 = arith.mulf %13, %14 : vector<2x1024xf32>
    %16 = vector.broadcast %1 : f32 to vector<2x1024xf32>
    %17 = arith.mulf %16, %8 : vector<2x1024xf32>
    %18 = math.exp %17 : vector<2x1024xf32>
    %cst_4 = arith.constant 1.000000e+00 : f32
    %19 = vector.broadcast %cst_4 : f32 to vector<2x1024xf32>
    %20 = arith.subf %18, %19 : vector<2x1024xf32>
    %21 = vector.broadcast %3 : f32 to vector<2x1024xf32>
    %22 = arith.mulf %20, %21 : vector<2x1024xf32>
    %23 = arith.addf %15, %22 : vector<2x1024xf32>
    %c0_5 = arith.constant 0 : index
    %c0_6 = arith.constant 0 : index
    %24 = vector.load %arg3[%c0_5, %c0_6] : memref<2x1024xf32, #tpu.memory_space<vmem>>, vector<2x1024xf32>
    tpu.vector_store %arg3[%c0_5, %c0_6], %23 {strides = array<i32>} : memref<2x1024xf32, #tpu.memory_space<vmem>>, vector<2x1024xf32>,
    return
  }
  func.func @transform_0(%arg0: i32) -> i32 {
    %c0_i32 = arith.constant 0 : i32
    %c0_i32_0 = arith.constant 0 : i32
    return %c0_i32 : i32
  }
  func.func @transform_1(%arg0: i32) -> (i32, i32) {
    %c0_i32 = arith.constant 0 : i32
    %c0_i32_0 = arith.constant 0 : i32
    return %arg0, %c0_i32 : i32, i32
  }
  func.func @transform_2(%arg0: i32) -> (i32, i32) {
    %c0_i32 = arith.constant 0 : i32
    %c0_i32_0 = arith.constant 0 : i32
    return %arg0, %c0_i32 : i32, i32
  }
}

</mosaic_0001>

<llo_original>
// kernel: tpu_custom_call.1
$region0: #{tpu_custom_call.1}
  #allocation0 [shape = 'u32[]', space=smem, size = 0x4, offset = 0x4, fixed_abs, tag = 'smem constant byte address 0x4 - core index']
  #allocation1 [shape = 'u32[144,128]{1,0:T(1,128)}', space=vmem, size = 0x12000, scoped, tag = 'internal scratch']
  %s0 = inlined_call_operand.hbm [shape: f32[4], index: 0, kind: input, shape index: {}]
  %s1 = inlined_call_operand.hbm [shape: f32[2,1024], index: 1, kind: input, shape index: {}]
  %s2 = inlined_call_operand.hbm [shape: f32[2,1024], index: 2, kind: output, shape index: {}]
  %s3 = sld [smem:[#allocation0]]
  $region26: #{tpu_custom_call.1} parent=0
    _
  %s5 = ssub.s32 1, %s3
  %s6 = scalar_select 0, %s5, %s3
  $region1: #{tpu_custom_call.1} parent=0
    #allocation2 [shape = 'u8[512]{0}', space=smem, size = 0x200, scoped, tag = 'input window, operand 0, single buffered']
    #allocation3 [shape = 's32[1]{0}', space=sflag, size = 0x4, scoped, tag = 'scoped memory for tpu_custom_call.1']
    #allocation4 [shape = 's32[1]{0}', space=sflag, size = 0x4, scoped, tag = 'scoped memory for tpu_custom_call.1']
    #allocation5 [shape = 's32[1]{0}', space=sflag, size = 0x4, scoped, tag = 'scoped memory for tpu_custom_call.1']
    #allocation6 [shape = 'u8[8192]{0}', space=vmem, size = 0x2000, scoped, tag = 'input window, operand 1, single buffered']
    #allocation7 [shape = 'u8[8192]{0}', space=vmem, size = 0x2000, scoped, tag = 'output window, operand 0, single buffered']
    %7 = vsyncpa [#allocation5], 0
    %8 = vsyncpa [#allocation3], 0
    %9 = vsyncpa [#allocation4], 0
    // Predicated region
    $region2: #{tpu_custom_call.1} parent=1 // pred_check
      _
    $region3: #{tpu_custom_call.1} parent=1 // pred_check_branch
      %11 = sbr.rel (0) target = $region5
    $region4: #{tpu_custom_call.1} parent=1 // pred_region
      %s13 = ssub.s32 16, 16
      %14 = vsyncadd [#allocation5], %s13
      %17 = dma.hbm_to_smem %s0, 16, [#allocation2], [#allocation5]
    $region5: #{tpu_custom_call.1} parent=1 // pred_fallthru
      _
    // Predicated region
    $region6: #{tpu_custom_call.1} parent=1 // pred_check
      _
    $region7: #{tpu_custom_call.1} parent=1 // pred_check_branch
      %19 = sbr.rel (0) target = $region9
    $region8: #{tpu_custom_call.1} parent=1 // pred_region
      %s21 = ssub.s32 256, 256
      %22 = vsyncadd [#allocation3], %s21
      %s24 = sshll.u32 [#allocation6], 4
      %s25 = int_to_ptr.vmem [resolvable:$true] %s24
      %27 = dma.hbm_to_vmem [thread:$0]  %s1, 256, %s25, [#allocation3]
    $region9: #{tpu_custom_call.1} parent=1 // pred_fallthru
      _
    // Predicated region
    $region10: #{tpu_custom_call.1} parent=1 // pred_check
      _
    $region11: #{tpu_custom_call.1} parent=1 // pred_check_branch
      %29 = sbr.rel (0) target = $region13
    $region12: #{tpu_custom_call.1} parent=1 // pred_region
      %30 = dma.done [#allocation5], 16
    $region13: #{tpu_custom_call.1} parent=1 // pred_fallthru
      _
    // Predicated region
    $region14: #{tpu_custom_call.1} parent=1 // pred_check
      _
    $region15: #{tpu_custom_call.1} parent=1 // pred_check_branch
      %32 = sbr.rel (0) target = $region17
    $region16: #{tpu_custom_call.1} parent=1 // pred_region
      %33 = dma.done [#allocation3], 256
    $region17: #{tpu_custom_call.1} parent=1 // pred_fallthru
      _
    %34 = sfence
    %s35 = sld [smem:[#allocation2]]
    %s36 = sld [smem:[#allocation2 + $0x1]]
    %s37 = sld [smem:[#allocation2 + $0x2]]
    %s38 = sld [smem:[#allocation2 + $0x3]]
    %v39 = vld [vmem:[#allocation6] sm:$0xff]
    %v40 = vld [vmem:[#allocation6 + $0x8] sm:$0xff]
    %v41 = vmax.f32 %v39, 0.0
    %v42 = vmax.f32 %v40, 0.0
    %v43 = vadd.f32 %v41, 1e-07
    %v44 = vadd.f32 %v42, 1e-07
    %v45 = vstv %s35
    %v46 = vmul.f32 %v45, %v43
    %v47 = vmul.f32 %v45, %v44
    %v48 = vadd.f32 %v46, 1.0
    %v49 = vadd.f32 %v47, 1.0
    %v50 = vlog2.pop %v48
    %v51 = vmul.f32 %v50, 0.6931472
    %v52 = vlog2.pop %v49
    %v53 = vmul.f32 %v52, 0.6931472
    %v54 = vstv %s37
    %v55 = vmul.f32 %v51, %v54
    %v56 = vmul.f32 %v53, %v54
    %v57 = vstv %s36
    %v58 = vmul.f32 %v57, %v43
    %v59 = vmul.f32 %v57, %v44
    %v60 = vmul.f32 %v58, 1.442695
    %v61 = vpow.pop %v60
    %v62 = vmul.f32 %v59, 1.442695
    %v63 = vpow.pop %v62
    %v64 = vsub.f32 %v61, 1.0
    %v65 = vsub.f32 %v63, 1.0
    %v66 = vstv %s38
    %v67 = vmul.f32 %v64, %v66
    %v68 = vmul.f32 %v65, %v66
    %v69 = vadd.f32 %v55, %v67
    %v70 = vadd.f32 %v56, %v68
    %71 = vst [vmem:[#allocation7] sm:$0xff] %v69
    %72 = vst [vmem:[#allocation7 + $0x8] sm:$0xff] %v70
    // Predicated region
    $region18: #{tpu_custom_call.1} parent=1 // pred_check
      _
    $region19: #{tpu_custom_call.1} parent=1 // pred_check_branch
      %74 = sbr.rel (0) target = $region21
    $region20: #{tpu_custom_call.1} parent=1 // pred_region
      %s76 = ssub.s32 256, 256
      %77 = vsyncadd [#allocation4], %s76
      %s79 = sshll.u32 [#allocation7], 4
      %s80 = int_to_ptr.vmem [resolvable:$true] %s79
      %82 = dma.vmem_to_hbm [thread:$0]  %s80, 256, %s2, [#allocation4]
    $region21: #{tpu_custom_call.1} parent=1 // pred_fallthru
      _
    // Predicated region
    $region22: #{tpu_custom_call.1} parent=1 // pred_check
      _
    $region23: #{tpu_custom_call.1} parent=1 // pred_check_branch
      %84 = sbr.rel (0) target = $region25
    $region24: #{tpu_custom_call.1} parent=1 // pred_region
      %85 = dma.done [#allocation4], 256
    $region25: #{tpu_custom_call.1} parent=1 // pred_fallthru
      _
    %86 = vsyncpa [#allocation3], 1
    %87 = vsyncpa [#allocation4], 1
    %88 = vsyncpa [#allocation5], 1

</llo_original>
